<compile_context>
chip_gen: v6e
topology: v6e:2x2x1
jax: 0.10.0
libtpu: 0.0.40
codegen_flags: <defaults>
</compile_context>

<pallas_src>
import functools
import math

import jax
import jax.numpy as jnp
from jax.experimental import pallas as pl
from jax.experimental.pallas import tpu as pltpu


# ----------------------------------------------------------------------------
# Parameter setup (plain JAX): sinusoidal table, identical to PyTorch __init__.
# ----------------------------------------------------------------------------
def make_pos_embedding(emb_size: int, maxlen: int = 5000) -> jnp.ndarray:
    den = jnp.exp(-jnp.arange(0, emb_size, 2, dtype=jnp.float32)
                  * math.log(10000.0) / emb_size)                      # (E//2,)
    pos = jnp.arange(0, maxlen, dtype=jnp.float32).reshape(maxlen, 1)  # (maxlen, 1)
    args = pos * den                                                   # (maxlen, E//2)
    pe = jnp.zeros((maxlen, emb_size), dtype=jnp.float32)
    pe = pe.at[:, 0::2].set(jnp.sin(args))
    pe = pe.at[:, 1::2].set(jnp.cos(args))
    return pe.reshape(maxlen, 1, emb_size)                             # (maxlen, 1, E)


# ----------------------------------------------------------------------------
# Pallas kernels (blocks are lane-dense: (ts, B*E) for x/out, (ts, E) for pe)
# ----------------------------------------------------------------------------
def _pe_add_kernel(x_ref, pe_ref, o_ref, *, batch: int, emb: int):
    pe = pe_ref[...]                                    # (ts, E) f32
    # static unroll over batch: pe broadcasts over the batch axis
    for b in range(batch):
        sl = slice(b * emb, (b + 1) * emb)
        o_ref[:, sl] = (x_ref[:, sl] + pe).astype(o_ref.dtype)


def _pe_add_dropout_kernel(x_ref, pe_ref, bits_ref, o_ref, *,
                           batch: int, emb: int, p: float):
    pe = pe_ref[...]                                    # (ts, E) f32
    threshold = jnp.uint32(min(int(p * float(2 ** 32)), 2 ** 32 - 1))
    scale = jnp.float32(1.0 / (1.0 - p))
    for b in range(batch):
        sl = slice(b * emb, (b + 1) * emb)
        y = (x_ref[:, sl] + pe) * scale                 # scale folded in
        keep = bits_ref[:, sl] >= threshold             # P(keep) = 1 - p
        o_ref[:, sl] = jnp.where(keep, y, 0.0).astype(o_ref.dtype)


# ----------------------------------------------------------------------------
# Wrapper
# ----------------------------------------------------------------------------
def positional_encoding_fwd(token_embedding: jnp.ndarray,
                            pos_embedding: jnp.ndarray,
                            *,
                            dropout_p: float = 0.1,
                            training: bool = False,
                            rng_key=None,
                            target_block_bytes: int = 4 * 1024 * 1024,
                            vmem_limit_bytes: int = 48 * 1024 * 1024) -> jnp.ndarray:
    """token_embedding: (S, B, E); pos_embedding: (maxlen, 1, E) float32."""
    S, B, E = token_embedding.shape
    maxlen = pos_embedding.shape[0]
    assert maxlen >= S, "pos_embedding table shorter than sequence"

    # lane-dense 2-D views (contiguous reshapes -> effectively free)
    x2d = token_embedding.reshape(S, B * E)
    pe2d = pos_embedding.reshape(maxlen, E).astype(jnp.float32)

    # --- tile sizing: big tiles so per-grid-step overhead (~0.35 us) is noise
    row_bytes = B * E * token_embedding.dtype.itemsize
    rows = max(1, int(target_block_bytes) // int(row_bytes))
    if rows >= S:
        # whole sequence in one block; slice pe so blocks == full array dims
        ts = S
        pe2d = pe2d[:S]
    else:
        ts = max(8, (min(rows, S) // 8) * 8)            # multiple of 8 (sublane)
    grid = (pl.cdiv(S, ts),)                            # ragged last block is masked

    x_spec = pl.BlockSpec((ts, B * E), lambda i: (i, 0))
    pe_spec = pl.BlockSpec((ts, E), lambda i: (i, 0))
    out_spec = pl.BlockSpec((ts, B * E), lambda i: (i, 0))
    out_shape = jax.ShapeDtypeStruct((S, B * E), token_embedding.dtype)
    cparams = pltpu.CompilerParams(
        dimension_semantics=("parallel",),
        vmem_limit_bytes=int(vmem_limit_bytes))

    if training and dropout_p > 0.0:
        if rng_key is None:
            rng_key = jax.random.PRNGKey(0)
        bits = jax.random.bits(rng_key, (S, B * E), dtype=jnp.uint32)
        bits_spec = pl.BlockSpec((ts, B * E), lambda i: (i, 0))
        kernel = functools.partial(_pe_add_dropout_kernel,
                                   batch=B, emb=E, p=float(dropout_p))
        out2d = pl.pallas_call(
            kernel,
            out_shape=out_shape,
            grid=grid,
            in_specs=[x_spec, pe_spec, bits_spec],
            out_specs=out_spec,
            compiler_params=cparams,
        )(x2d, pe2d, bits)
    else:
        # eval mode: dropout is identity (matches nn.Dropout.eval())
        kernel = functools.partial(_pe_add_kernel, batch=B, emb=E)
        out2d = pl.pallas_call(
            kernel,
            out_shape=out_shape,
            grid=grid,
            in_specs=[x_spec, pe_spec],
            out_specs=out_spec,
            compiler_params=cparams,
        )(x2d, pe2d)

    return out2d.reshape(S, B, E)


# ----------------------------------------------------------------------------
# Demo / correctness check
# ----------------------------------------------------------------------------
if __name__ == "__main__":
    SEQ, BATCH, EMB = 8, 2, 32
    MAXLEN = 64          # small maxlen for the demo (module default is 5000)
    DROPOUT_P = 0.1

    key = jax.random.PRNGKey(0)
    x = jax.random.normal(key, (SEQ, BATCH, EMB), dtype=jnp.float32)
    pos_embedding = make_pos_embedding(EMB, maxlen=MAXLEN)

    # eval-mode forward (dropout == identity)
    out = positional_encoding_fwd(x, pos_embedding,
                                  dropout_p=DROPOUT_P, training=False)
    out = jax.block_until_ready(out)

    ref = x + pos_embedding[:SEQ]
    assert out.shape == (SEQ, BATCH, EMB)
    assert jnp.allclose(out, ref, atol=1e-5), "eval-path mismatch vs reference"

    # training-mode forward (inverted dropout): every element must be either 0
    # or the reference value scaled by 1/(1-p)
    out_train = positional_encoding_fwd(x, pos_embedding,
                                        dropout_p=DROPOUT_P, training=True,
                                        rng_key=jax.random.PRNGKey(123))
    out_train = jax.block_until_ready(out_train)
    scale = 1.0 / (1.0 - DROPOUT_P)
    ok = jnp.isclose(out_train, ref * scale, atol=1e-5) | (out_train == 0.0)
    assert bool(jnp.all(ok)), "dropout-path mismatch vs reference"

    print("KERNEL_OK")
</pallas_src>

<mosaic_0001>
module attributes {stable_mosaic.version = 11 : i64} {
  func.func @_pe_add_kernel(%arg0: i32, %arg1: memref<8x64xf32, #tpu.memory_space<vmem>>, %arg2: memref<8x32xf32, #tpu.memory_space<vmem>>, %arg3: memref<8x64xf32, #tpu.memory_space<vmem>>) attributes {dimension_semantics = [#tpu.dimension_semantics<parallel>], iteration_bounds = array<i64: 1>, scalar_prefetch = 0 : i64, scratch_operands = 0 : i64, tpu.core_type = #tpu.core_type<tc>, window_params = [{transform_indices = @transform_0, window_bounds = array<i64: 8, 64>}, {transform_indices = @transform_1, window_bounds = array<i64: 8, 32>}, {transform_indices = @transform_2, window_bounds = array<i64: 8, 64>}]} {
    %c0 = arith.constant 0 : index
    %c0_0 = arith.constant 0 : index
    %0 = vector.load %arg2[%c0, %c0_0] : memref<8x32xf32, #tpu.memory_space<vmem>>, vector<8x32xf32>
    %c0_1 = arith.constant 0 : index
    %c0_2 = arith.constant 0 : index
    %1 = vector.load %arg1[%c0_1, %c0_2] : memref<8x64xf32, #tpu.memory_space<vmem>>, vector<8x32xf32>
    %2 = arith.addf %1, %0 : vector<8x32xf32>
    %c0_3 = arith.constant 0 : index
    %c0_4 = arith.constant 0 : index
    %3 = vector.load %arg3[%c0_3, %c0_4] : memref<8x64xf32, #tpu.memory_space<vmem>>, vector<8x32xf32>
    tpu.vector_store %arg3[%c0_3, %c0_4], %2 {strides = array<i32>} : memref<8x64xf32, #tpu.memory_space<vmem>>, vector<8x32xf32>,
    %c0_5 = arith.constant 0 : index
    %c32 = arith.constant 32 : index
    %4 = vector.load %arg1[%c0_5, %c32] : memref<8x64xf32, #tpu.memory_space<vmem>>, vector<8x32xf32>
    %5 = arith.addf %4, %0 : vector<8x32xf32>
    %c0_6 = arith.constant 0 : index
    %c32_7 = arith.constant 32 : index
    %6 = vector.load %arg3[%c0_6, %c32_7] : memref<8x64xf32, #tpu.memory_space<vmem>>, vector<8x32xf32>
    tpu.vector_store %arg3[%c0_6, %c32_7], %5 {strides = array<i32>} : memref<8x64xf32, #tpu.memory_space<vmem>>, vector<8x32xf32>,
    return
  }
  func.func @transform_0(%arg0: i32) -> (i32, i32) {
    %c0_i32 = arith.constant 0 : i32
    %c0_i32_0 = arith.constant 0 : i32
    return %arg0, %c0_i32 : i32, i32
  }
  func.func @transform_1(%arg0: i32) -> (i32, i32) {
    %c0_i32 = arith.constant 0 : i32
    %c0_i32_0 = arith.constant 0 : i32
    return %arg0, %c0_i32 : i32, i32
  }
  func.func @transform_2(%arg0: i32) -> (i32, i32) {
    %c0_i32 = arith.constant 0 : i32
    %c0_i32_0 = arith.constant 0 : i32
    return %arg0, %c0_i32 : i32, i32
  }
}

</mosaic_0001>

<llo_original>
// kernel: tpu_custom_call.1
$region0: #{tpu_custom_call.1}
  #allocation0 [shape = 'u32[]', space=smem, size = 0x4, offset = 0x4, fixed_abs, tag = 'smem constant byte address 0x4 - core index']
  #allocation1 [shape = 'u32[144,128]{1,0:T(1,128)}', space=vmem, size = 0x12000, scoped, tag = 'internal scratch']
  %s0 = inlined_call_operand.hbm [shape: f32[8,64], index: 0, kind: input, shape index: {}]
  %s1 = inlined_call_operand.hbm [shape: f32[8,32], index: 1, kind: input, shape index: {}]
  %s2 = inlined_call_operand.hbm [shape: f32[8,64], index: 2, kind: output, shape index: {}]
  %s3 = sld [smem:[#allocation0]]
  $region26: #{tpu_custom_call.1} parent=0
    _
  %s5 = ssub.s32 1, %s3
  %s6 = scalar_select 0, %s5, %s3
  $region1: #{tpu_custom_call.1} parent=0
    #allocation2 [shape = 'u8[4096]{0}', space=vmem, size = 0x1000, scoped, tag = 'input window, operand 0, single buffered']
    #allocation3 [shape = 's32[1]{0}', space=sflag, size = 0x4, scoped, tag = 'scoped memory for tpu_custom_call.1']
    #allocation4 [shape = 's32[1]{0}', space=sflag, size = 0x4, scoped, tag = 'scoped memory for tpu_custom_call.1']
    #allocation5 [shape = 'u8[4096]{0}', space=vmem, size = 0x1000, scoped, tag = 'input window, operand 1, single buffered']
    #allocation6 [shape = 's32[1]{0}', space=sflag, size = 0x4, scoped, tag = 'scoped memory for tpu_custom_call.1']
    #allocation7 [shape = 'u8[4096]{0}', space=vmem, size = 0x1000, scoped, tag = 'output window, operand 0, single buffered']
    %7 = vsyncpa [#allocation3], 0
    %8 = vsyncpa [#allocation6], 0
    %9 = vsyncpa [#allocation4], 0
    // Predicated region
    $region2: #{tpu_custom_call.1} parent=1 // pred_check
      _
    $region3: #{tpu_custom_call.1} parent=1 // pred_check_branch
      %11 = sbr.rel (0) target = $region5
    $region4: #{tpu_custom_call.1} parent=1 // pred_region
      %s13 = ssub.s32 128, 128
      %14 = vsyncadd [#allocation3], %s13
      %s16 = sshll.u32 [#allocation2], 4
      %s17 = int_to_ptr.vmem [resolvable:$true] %s16
      %19 = dma.hbm_to_vmem [thread:$0]  %s0, 128, %s17, [#allocation3]
    $region5: #{tpu_custom_call.1} parent=1 // pred_fallthru
      _
    // Predicated region
    $region6: #{tpu_custom_call.1} parent=1 // pred_check
      _
    $region7: #{tpu_custom_call.1} parent=1 // pred_check_branch
      %21 = sbr.rel (0) target = $region9
    $region8: #{tpu_custom_call.1} parent=1 // pred_region
      %s23 = ssub.s32 128, 128
      %24 = vsyncadd [#allocation6], %s23
      %s26 = sshll.u32 [#allocation5], 4
      %s27 = int_to_ptr.vmem [resolvable:$true] %s26
      %29 = dma.hbm_to_vmem [thread:$0]  %s1, 128, %s27, [#allocation6]
    $region9: #{tpu_custom_call.1} parent=1 // pred_fallthru
      _
    // Predicated region
    $region10: #{tpu_custom_call.1} parent=1 // pred_check
      _
    $region11: #{tpu_custom_call.1} parent=1 // pred_check_branch
      %31 = sbr.rel (0) target = $region13
    $region12: #{tpu_custom_call.1} parent=1 // pred_region
      %32 = dma.done [#allocation3], 128
    $region13: #{tpu_custom_call.1} parent=1 // pred_fallthru
      _
    // Predicated region
    $region14: #{tpu_custom_call.1} parent=1 // pred_check
      _
    $region15: #{tpu_custom_call.1} parent=1 // pred_check_branch
      %34 = sbr.rel (0) target = $region17
    $region16: #{tpu_custom_call.1} parent=1 // pred_region
      %35 = dma.done [#allocation6], 128
    $region17: #{tpu_custom_call.1} parent=1 // pred_fallthru
      _
    %v36 = vld [vmem:[#allocation5] sm:$0xff]
    %v37 = vld [vmem:[#allocation2] sm:$0xff]
    %v38 = vadd.f32 %v37, %v36
    %vm39 = vcmask 261120
    %40 = vst.msk [vmem:[#allocation7] sm:$0xff] %vm39, %v38
    %v41 = vld [vmem:[#allocation2] sm:$0xff]
    %43 = vrot.lane.b32.xlu0 %v36, 32
    %v44 = vpop.permute.xlu0 %43
    %v46 = vadd.f32 %v41, %v44
    %vm47 = vcmask 523520
    %48 = vst.msk [vmem:[#allocation7] sm:$0xff] %vm47, %v46
    // Predicated region
    $region18: #{tpu_custom_call.1} parent=1 // pred_check
      _
    $region19: #{tpu_custom_call.1} parent=1 // pred_check_branch
      %50 = sbr.rel (0) target = $region21
    $region20: #{tpu_custom_call.1} parent=1 // pred_region
      %s52 = ssub.s32 128, 128
      %53 = vsyncadd [#allocation4], %s52
      %s55 = sshll.u32 [#allocation7], 4
      %s56 = int_to_ptr.vmem [resolvable:$true] %s55
      %58 = dma.vmem_to_hbm [thread:$0]  %s56, 128, %s2, [#allocation4]
    $region21: #{tpu_custom_call.1} parent=1 // pred_fallthru
      _
    // Predicated region
    $region22: #{tpu_custom_call.1} parent=1 // pred_check
      _
    $region23: #{tpu_custom_call.1} parent=1 // pred_check_branch
      %60 = sbr.rel (0) target = $region25
    $region24: #{tpu_custom_call.1} parent=1 // pred_region
      %61 = dma.done [#allocation4], 128
    $region25: #{tpu_custom_call.1} parent=1 // pred_fallthru
      _
    %62 = vsyncpa [#allocation3], 1
    %63 = vsyncpa [#allocation6], 1
    %64 = vsyncpa [#allocation4], 1

</llo_original>
